<compile_context>
chip_gen: v7x
topology: tpu7x:2x2x1
jax: 0.10.0
libtpu: 0.0.40
codegen_flags: <defaults>
</compile_context>

<pallas_src>
import functools

import numpy as np
import jax
import jax.numpy as jnp
from jax import lax
from jax.experimental import pallas as pl
from jax.experimental.pallas import tpu as pltpu

_EPS = 1e-8  # F.cosine_similarity eps


def _cosine_matrix(x):
    """cos[i,j] = <x_i,x_j> / max(||x_i||*||x_j||, eps)  (torch semantics).

    Norms are taken straight from the (B,D) input (VPU work) instead of
    masking / reducing the (B,B) gram matrix."""
    dots = lax.dot_general(x, x, (((1,), (1,)), ((), ())),
                           preferred_element_type=jnp.float32)       # (B,B)
    nsq = jnp.sum(x * x, axis=1, keepdims=True)                      # (B,1)
    denom_sq = jnp.maximum(nsq * jnp.transpose(nsq), _EPS * _EPS)    # (B,B)
    return dots * lax.rsqrt(denom_sq)


def _row_quantile(x, alpha, n):
    """torch.quantile(x, alpha, dim=1, interpolation='linear'), x:(R,n).

    Rank-counting formulation: accumulate a (R,n) rank matrix with VPU-only
    broadcast compares (no per-column lane reductions), then select the two
    needed order statistics with just two lane-max reductions at the end.
    NOTE: relies on x >= 0 (true here: masked exp values) for the -1 sentinel.
    (A pltpu.roll-based accumulation would co-issue XLU+VPU, but roll on a
    lane width < 128 is not guaranteed to lower, so broadcasts are used.)"""
    q = alpha * (n - 1)
    k_lo = int(np.floor(q))
    k_hi = min(k_lo + 1, n - 1)
    frac = float(q - k_lo)
    rank = jnp.zeros_like(x)
    for c in range(n):                        # n is static; VPU-only body
        col = x[:, c:c + 1]                   # static lane slice (R,1)
        rank = rank + (col < x).astype(jnp.float32)
    lo = jnp.max(jnp.where(rank <= float(k_lo), x, -1.0), axis=1, keepdims=True)
    hi = jnp.max(jnp.where(rank <= float(k_hi), x, -1.0), axis=1, keepdims=True)
    return lo + frac * (hi - lo)


def _hcl_kernel(pi_ref, pj_ref,                       # scalar-prefetch (SMEM)
                emb_ref, hpe_ref, hne_ref, code_ref,  # VMEM inputs
                sim_ref, loss_ref,                    # VMEM outputs
                expm_ref, rows_ref, posr_ref,         # VMEM scratch
                *, tau, alpha, train, num_pairs):
    B = emb_ref.shape[0]
    P = num_pairs
    inv_tau = 1.0 / tau

    r_idx = lax.broadcasted_iota(jnp.int32, (B, B), 0)
    c_idx = lax.broadcasted_iota(jnp.int32, (B, B), 1)
    eye = r_idx == c_idx

    # --- similarity matrix --------------------------------------------------
    sim_pos = _cosine_matrix(hpe_ref[...])   # hard-positive cosine (MXU gram)
    sim_neg = _cosine_matrix(hne_ref[...])   # hard-negative cosine (MXU gram)

    # The original-embedding gram is only ever read on its diagonal:
    # cos(x_i, x_i) = |x_i|^2 / max(|x_i|^2, eps)  ->  (B,1), no matmul needed.
    emb = emb_ref[...]
    nsq = jnp.sum(emb * emb, axis=1, keepdims=True)
    diag_cos = nsq / jnp.maximum(nsq, _EPS)

    # code: 0 = not positive, 1 = one-directional positive (gets hard-neg sim),
    #       2 = symmetric positive (keeps hard-pos sim).
    code = code_ref[...]
    final_sim = jnp.where(eye, diag_cos,
                          jnp.where(code == 2, sim_pos, sim_neg))
    sim_ref[...] = final_sim

    # --- compute_loss --------------------------------------------------------
    # single B^2 exp, with the loss mask (diag + all positive positions) folded
    # in; stored to scratch so pair rows can be gathered from it.
    loss_mask = jnp.logical_or(eye, code > 0)
    expm_ref[...] = jnp.where(loss_mask, 0.0, jnp.exp(final_sim * inv_tau))

    # Row gathers via scalar-prefetched pair indices (dynamic sublane slices)
    # replace the previous one-hot (P,B)@(B,B) MXU gather matmuls.
    lane = lax.broadcasted_iota(jnp.int32, (1, B), 1)
    for p in range(P):                       # P static & small -> trace unroll
        i_idx = pi_ref[p]
        j_idx = pj_ref[p]
        # masked-exp rows for pair p: rows [0:P) are "i" rows, [P:2P) "j" rows
        rows_ref[pl.ds(p, 1), :] = expm_ref[pl.ds(i_idx, 1), :]
        rows_ref[pl.ds(p + P, 1), :] = expm_ref[pl.ds(j_idx, 1), :]
        # unmasked similarity at the positive positions (one-hot lane pick)
        srow_i = sim_ref[pl.ds(i_idx, 1), :]
        srow_j = sim_ref[pl.ds(j_idx, 1), :]
        posr_ref[pl.ds(p, 1), :] = jnp.where(lane == j_idx, srow_i, 0.0)
        posr_ref[pl.ds(p + P, 1), :] = jnp.where(lane == i_idx, srow_j, 0.0)

    exp_rows = rows_ref[...]                                    # (2P, B)
    pos_sim = jnp.sum(posr_ref[...], axis=1, keepdims=True)     # (2P, 1)
    pos = jnp.exp(pos_sim * inv_tau)                            # exp_sim[i,j]/[j,i]

    if train:  # stage in ['train', 'sanity_check']
        thr = _row_quantile(exp_rows, alpha, B)                 # (2P, 1)
        sums = jnp.sum(jnp.where(exp_rows >= thr, exp_rows, 0.0),
                       axis=1, keepdims=True)
    else:
        sums = jnp.sum(exp_rows, axis=1, keepdims=True)

    loss_terms = -jnp.log(pos / (pos + sums))                   # (2P, 1)
    loss_ref[...] = jnp.sum(loss_terms, axis=0, keepdims=True) / (2.0 * P)


def hcl_forward_pallas(emb, hpe, hne, mask_code, pi, pj, *,
                       tau=0.2, alpha=0.8, stage="train"):
    B, D = emb.shape
    P = int(pi.shape[0])
    kernel = functools.partial(
        _hcl_kernel, tau=float(tau), alpha=float(alpha),
        train=stage in ("train", "sanity_check"), num_pairs=P)

    # Explicit VMEM budget: generous headroom over the estimate, but bounded so
    # it stays within v5e's scoped default region and v7x's 64 MiB physical.
    vmem_est = 4 * (3 * B * D + 2 * B * B + 1      # inputs + outputs
                    + B * B + 4 * P * B)           # scratch
    vmem_limit = int(min(max(4 * vmem_est + (2 << 20), 16 << 20), 48 << 20))

    grid_spec = pltpu.PrefetchScalarGridSpec(
        num_scalar_prefetch=2,                     # pi, pj -> SMEM
        grid=(1,),
        in_specs=[pl.BlockSpec((B, D), lambda i, pi, pj: (0, 0)),
                  pl.BlockSpec((B, D), lambda i, pi, pj: (0, 0)),
                  pl.BlockSpec((B, D), lambda i, pi, pj: (0, 0)),
                  pl.BlockSpec((B, B), lambda i, pi, pj: (0, 0))],
        out_specs=[pl.BlockSpec((B, B), lambda i, pi, pj: (0, 0)),
                   pl.BlockSpec((1, 1), lambda i, pi, pj: (0, 0))],
        scratch_shapes=[pltpu.VMEM((B, B), jnp.float32),        # masked exp
                        pltpu.VMEM((2 * P, B), jnp.float32),    # gathered rows
                        pltpu.VMEM((2 * P, B), jnp.float32)])   # pos picks

    sim, loss = pl.pallas_call(
        kernel,
        out_shape=(jax.ShapeDtypeStruct((B, B), jnp.float32),
                   jax.ShapeDtypeStruct((1, 1), jnp.float32)),
        grid_spec=grid_spec,
        compiler_params=pltpu.CompilerParams(
            dimension_semantics=("arbitrary",),
            vmem_limit_bytes=vmem_limit),
    )(pi, pj, emb, hpe, hne, mask_code)
    return sim, loss[0, 0]


if __name__ == "__main__":
    B, D = 8, 32
    tau, alpha = 0.2, 0.8
    lam_ex = 0.5 + 1.0   # generate_lambda(...)=0.5, extrapolation adds 1
    lam_in = 0.5         # interpolation lambda

    key = jax.random.PRNGKey(0)
    emb = jax.random.normal(key, (B, D), dtype=jnp.float32)

    # positive pairs (mix of symmetric and one-directional pairs)
    pos_list = [(0, 1), (1, 0), (2, 3), (3, 2), (4, 5), (6, 7)]
    P = len(pos_list)
    pos_set = set(pos_list)

    # generate_negative_pairs: all ordered (i,j), i!=j, minus the exact positive
    # orderings. torch iterates a Python set (nondeterministic order); fixed
    # sorted order here.
    all_pairs = {(i, j) for i in range(B) for j in range(B) if i != j}
    neg_list = sorted(all_pairs - pos_set)

    # hard positive / hard negative embeddings: emulate the torch advanced-
    # indexing scatters (i-scatter first, then j-scatter, last write wins).
    def partner_of(pairs):
        part = np.arange(B)
        touched = np.zeros(B, dtype=bool)
        for i, j in pairs:
            part[i] = j
            touched[i] = True
        for i, j in pairs:
            part[j] = i
            touched[j] = True
        return jnp.asarray(part), jnp.asarray(touched)

    p_part, p_touch = partner_of(pos_list)
    n_part, n_touch = partner_of(neg_list)
    hpe = jnp.where(p_touch[:, None], lam_ex * emb + (1.0 - lam_ex) * emb[p_part], emb)
    hne = jnp.where(n_touch[:, None], lam_in * emb + (1.0 - lam_in) * emb[n_part], emb)
    # TODO(synk): the torch asserts/prints inside extrapolate/interpolate are host-side checks, not reproduced.

    # single coded mask: 0 = not positive, 1 = one-way positive, 2 = symmetric
    code = np.zeros((B, B), np.int32)
    for i, j in pos_list:
        code[i, j] = max(code[i, j], 1)
        code[j, i] = max(code[j, i], 1)
    for i, j in pos_list:
        if (j, i) in pos_set:
            code[i, j] = 2

    pi_np = np.array([i for i, _ in pos_list], np.int32)
    pj_np = np.array([j for _, j in pos_list], np.int32)

    sim, loss = hcl_forward_pallas(emb, hpe, hne, jnp.asarray(code),
                                   jnp.asarray(pi_np), jnp.asarray(pj_np),
                                   tau=tau, alpha=alpha, stage="train")
    jax.block_until_ready((sim, loss))

    # ---- pure-JAX reference check ----
    def cos_mat(x):
        d = x @ x.T
        n = jnp.sqrt(jnp.sum(x * x, axis=1))
        return d / jnp.maximum(n[:, None] * n[None, :], _EPS)

    eye = jnp.eye(B, dtype=bool)
    code_j = jnp.asarray(code)
    ref_sim = jnp.where(eye, cos_mat(emb),
                        jnp.where(code_j == 2, cos_mat(hpe), cos_mat(hne)))
    e = jnp.exp(ref_sim / tau)
    em = jnp.where(eye | (code_j > 0), 0.0, e)
    ei, ej = em[pi_np], em[pj_np]
    p_ij, p_ji = e[pi_np, pj_np], e[pj_np, pi_np]
    ti = jnp.quantile(ei, alpha, axis=1, keepdims=True)
    tj = jnp.quantile(ej, alpha, axis=1, keepdims=True)
    si = jnp.sum(jnp.where(ei >= ti, ei, 0.0), axis=1)
    sj = jnp.sum(jnp.where(ej >= tj, ej, 0.0), axis=1)
    ref_loss = jnp.sum(-jnp.log(p_ij / (p_ij + si)) - jnp.log(p_ji / (p_ji + sj))) / (2 * P)

    assert jnp.allclose(sim, ref_sim, atol=1e-5, rtol=1e-5)
    assert jnp.allclose(loss, ref_loss, atol=1e-4, rtol=1e-4)
    # forward-equivalent outputs: (pos_pairs, neg_pairs, hpe, hne, sim, loss)
    print("KERNEL_OK")
</pallas_src>

<mosaic_0001>
module attributes {stable_mosaic.version = 11 : i64} {
  func.func @_hcl_kernel(%arg0: i32, %arg1: memref<6xi32, #tpu.memory_space<smem>>, %arg2: memref<6xi32, #tpu.memory_space<smem>>, %arg3: memref<8x32xf32, #tpu.memory_space<vmem>>, %arg4: memref<8x32xf32, #tpu.memory_space<vmem>>, %arg5: memref<8x32xf32, #tpu.memory_space<vmem>>, %arg6: memref<8x8xi32, #tpu.memory_space<vmem>>, %arg7: memref<8x8xf32, #tpu.memory_space<vmem>>, %arg8: memref<1x1xf32, #tpu.memory_space<vmem>>, %arg9: memref<8x8xf32, #tpu.memory_space<vmem>>, %arg10: memref<12x8xf32, #tpu.memory_space<vmem>>, %arg11: memref<12x8xf32, #tpu.memory_space<vmem>>) attributes {dimension_semantics = [#tpu.dimension_semantics<arbitrary>], iteration_bounds = array<i64: 1>, scalar_prefetch = 2 : i64, scratch_operands = 3 : i64, tpu.core_type = #tpu.core_type<tc>, window_params = [{pipeline_mode = #tpu.pipeline_mode<synchronous>, transform_indices = @transform_0, window_bounds = array<i64: 8, 32>}, {pipeline_mode = #tpu.pipeline_mode<synchronous>, transform_indices = @transform_1, window_bounds = array<i64: 8, 32>}, {pipeline_mode = #tpu.pipeline_mode<synchronous>, transform_indices = @transform_2, window_bounds = array<i64: 8, 32>}, {pipeline_mode = #tpu.pipeline_mode<synchronous>, transform_indices = @transform_3, window_bounds = array<i64: 8, 8>}, {pipeline_mode = #tpu.pipeline_mode<synchronous>, transform_indices = @transform_4, window_bounds = array<i64: 8, 8>}, {pipeline_mode = #tpu.pipeline_mode<synchronous>, transform_indices = @transform_5, window_bounds = array<i64: 1, 1>}]} {
    %0 = tpu.iota {dimensions = array<i32: 0>} : vector<8x8xi32>
    %1 = tpu.iota {dimensions = array<i32: 1>} : vector<8x8xi32>
    %2 = arith.cmpi eq, %0, %1 : vector<8x8xi32>
    %c0 = arith.constant 0 : index
    %c0_0 = arith.constant 0 : index
    %3 = vector.load %arg4[%c0, %c0_0] : memref<8x32xf32, #tpu.memory_space<vmem>>, vector<8x32xf32>
    %cst = arith.constant dense<0.000000e+00> : vector<8x8xf32>
    %4 = tpu.matmul %3, %3, %cst {dimension_numbers = #tpu.dot_dimension_numbers<[1], [1], [0], [0], [0, 0, 1, 0], [], []>} : vector<8x32xf32>, vector<8x32xf32>, vector<8x8xf32> -> vector<8x8xf32>
    %5 = arith.mulf %3, %3 : vector<8x32xf32>
    %cst_1 = arith.constant dense<0.000000e+00> : vector<8xf32>
    %6 = vector.multi_reduction <add>, %5, %cst_1 [1] : vector<8x32xf32> to vector<8xf32>
    %7 = vector.shape_cast %6 : vector<8xf32> to vector<8x1xf32>
    %8 = tpu.transpose %7, [1, 0] : vector<8x1xf32> -> vector<1x8xf32>
    %9 = vector.broadcast %7 : vector<8x1xf32> to vector<8x8xf32>
    %10 = vector.broadcast %8 : vector<1x8xf32> to vector<8x8xf32>
    %11 = arith.mulf %9, %10 : vector<8x8xf32>
    %cst_2 = arith.constant 1.000000e-16 : f32
    %12 = vector.broadcast %cst_2 : f32 to vector<8x8xf32>
    %13 = arith.maximumf %11, %12 : vector<8x8xf32>
    %14 = math.rsqrt %13 : vector<8x8xf32>
    %15 = arith.mulf %4, %14 : vector<8x8xf32>
    %c0_3 = arith.constant 0 : index
    %c0_4 = arith.constant 0 : index
    %16 = vector.load %arg5[%c0_3, %c0_4] : memref<8x32xf32, #tpu.memory_space<vmem>>, vector<8x32xf32>
    %cst_5 = arith.constant dense<0.000000e+00> : vector<8x8xf32>
    %17 = tpu.matmul %16, %16, %cst_5 {dimension_numbers = #tpu.dot_dimension_numbers<[1], [1], [0], [0], [0, 0, 1, 0], [], []>} : vector<8x32xf32>, vector<8x32xf32>, vector<8x8xf32> -> vector<8x8xf32>
    %18 = arith.mulf %16, %16 : vector<8x32xf32>
    %cst_6 = arith.constant dense<0.000000e+00> : vector<8xf32>
    %19 = vector.multi_reduction <add>, %18, %cst_6 [1] : vector<8x32xf32> to vector<8xf32>
    %20 = vector.shape_cast %19 : vector<8xf32> to vector<8x1xf32>
    %21 = tpu.transpose %20, [1, 0] : vector<8x1xf32> -> vector<1x8xf32>
    %22 = vector.broadcast %20 : vector<8x1xf32> to vector<8x8xf32>
    %23 = vector.broadcast %21 : vector<1x8xf32> to vector<8x8xf32>
    %24 = arith.mulf %22, %23 : vector<8x8xf32>
    %cst_7 = arith.constant 1.000000e-16 : f32
    %25 = vector.broadcast %cst_7 : f32 to vector<8x8xf32>
    %26 = arith.maximumf %24, %25 : vector<8x8xf32>
    %27 = math.rsqrt %26 : vector<8x8xf32>
    %28 = arith.mulf %17, %27 : vector<8x8xf32>
    %c0_8 = arith.constant 0 : index
    %c0_9 = arith.constant 0 : index
    %29 = vector.load %arg3[%c0_8, %c0_9] : memref<8x32xf32, #tpu.memory_space<vmem>>, vector<8x32xf32>
    %30 = arith.mulf %29, %29 : vector<8x32xf32>
    %cst_10 = arith.constant dense<0.000000e+00> : vector<8xf32>
    %31 = vector.multi_reduction <add>, %30, %cst_10 [1] : vector<8x32xf32> to vector<8xf32>
    %32 = vector.shape_cast %31 : vector<8xf32> to vector<8x1xf32>
    %cst_11 = arith.constant 9.99999993E-9 : f32
    %33 = vector.broadcast %cst_11 : f32 to vector<8x1xf32>
    %34 = arith.maximumf %32, %33 : vector<8x1xf32>
    %35 = arith.divf %32, %34 : vector<8x1xf32>
    %c0_12 = arith.constant 0 : index
    %c0_13 = arith.constant 0 : index
    %36 = vector.load %arg6[%c0_12, %c0_13] : memref<8x8xi32, #tpu.memory_space<vmem>>, vector<8x8xi32>
    %c2_i32 = arith.constant 2 : i32
    %37 = vector.broadcast %c2_i32 : i32 to vector<8x8xi32>
    %38 = arith.cmpi eq, %36, %37 : vector<8x8xi32>
    %39 = arith.select %38, %15, %28 : vector<8x8xi1>, vector<8x8xf32>
    %40 = vector.shape_cast %35 : vector<8x1xf32> to vector<8x1xf32>
    %41 = vector.broadcast %40 : vector<8x1xf32> to vector<8x8xf32>
    %42 = arith.select %2, %41, %39 : vector<8x8xi1>, vector<8x8xf32>
    %c0_14 = arith.constant 0 : index
    %c0_15 = arith.constant 0 : index
    %43 = vector.load %arg7[%c0_14, %c0_15] : memref<8x8xf32, #tpu.memory_space<vmem>>, vector<8x8xf32>
    tpu.vector_store %arg7[%c0_14, %c0_15], %42 {strides = array<i32>} : memref<8x8xf32, #tpu.memory_space<vmem>>, vector<8x8xf32>,
    %c0_i32 = arith.constant 0 : i32
    %44 = vector.broadcast %c0_i32 : i32 to vector<8x8xi32>
    %45 = arith.cmpi sgt, %36, %44 : vector<8x8xi32>
    %46 = arith.ori %2, %45 : vector<8x8xi1>
    %cst_16 = arith.constant 5.000000e+00 : f32
    %47 = vector.broadcast %cst_16 : f32 to vector<8x8xf32>
    %48 = arith.mulf %42, %47 : vector<8x8xf32>
    %49 = math.exp %48 : vector<8x8xf32>
    %cst_17 = arith.constant 0.000000e+00 : f32
    %50 = vector.broadcast %cst_17 : f32 to vector<8x8xf32>
    %51 = arith.select %46, %50, %49 : vector<8x8xi1>, vector<8x8xf32>
    %c0_18 = arith.constant 0 : index
    %c0_19 = arith.constant 0 : index
    %52 = vector.load %arg9[%c0_18, %c0_19] : memref<8x8xf32, #tpu.memory_space<vmem>>, vector<8x8xf32>
    tpu.vector_store %arg9[%c0_18, %c0_19], %51 {strides = array<i32>} : memref<8x8xf32, #tpu.memory_space<vmem>>, vector<8x8xf32>,
    %53 = tpu.iota {dimensions = array<i32: 1>} : vector<1x8xi32>
    %c0_20 = arith.constant 0 : index
    %54 = memref.load %arg1[%c0_20] : memref<6xi32, #tpu.memory_space<smem>>
    %c0_21 = arith.constant 0 : index
    %55 = memref.load %arg2[%c0_21] : memref<6xi32, #tpu.memory_space<smem>>
    %56 = arith.index_cast %54 : i32 to index
    %c0_22 = arith.constant 0 : index
    %57 = vector.load %arg9[%56, %c0_22] : memref<8x8xf32, #tpu.memory_space<vmem>>, vector<1x8xf32>
    %c0_23 = arith.constant 0 : index
    %c0_24 = arith.constant 0 : index
    %58 = vector.load %arg10[%c0_23, %c0_24] : memref<12x8xf32, #tpu.memory_space<vmem>>, vector<1x8xf32>
    tpu.vector_store %arg10[%c0_23, %c0_24], %57 {strides = array<i32>} : memref<12x8xf32, #tpu.memory_space<vmem>>, vector<1x8xf32>,
    %59 = arith.index_cast %55 : i32 to index
    %c0_25 = arith.constant 0 : index
    %60 = vector.load %arg9[%59, %c0_25] : memref<8x8xf32, #tpu.memory_space<vmem>>, vector<1x8xf32>
    %c6 = arith.constant 6 : index
    %c0_26 = arith.constant 0 : index
    %61 = vector.load %arg10[%c6, %c0_26] : memref<12x8xf32, #tpu.memory_space<vmem>>, vector<1x8xf32>
    tpu.vector_store %arg10[%c6, %c0_26], %60 {strides = array<i32>} : memref<12x8xf32, #tpu.memory_space<vmem>>, vector<1x8xf32>,
    %62 = arith.index_cast %54 : i32 to index
    %c0_27 = arith.constant 0 : index
    %63 = vector.load %arg7[%62, %c0_27] : memref<8x8xf32, #tpu.memory_space<vmem>>, vector<1x8xf32>
    %64 = arith.index_cast %55 : i32 to index
    %c0_28 = arith.constant 0 : index
    %65 = vector.load %arg7[%64, %c0_28] : memref<8x8xf32, #tpu.memory_space<vmem>>, vector<1x8xf32>
    %66 = vector.broadcast %55 : i32 to vector<1x8xi32>
    %67 = arith.cmpi eq, %53, %66 : vector<1x8xi32>
    %cst_29 = arith.constant 0.000000e+00 : f32
    %68 = vector.broadcast %cst_29 : f32 to vector<1x8xf32>
    %69 = arith.select %67, %63, %68 : vector<1x8xi1>, vector<1x8xf32>
    %c0_30 = arith.constant 0 : index
    %c0_31 = arith.constant 0 : index
    %70 = vector.load %arg11[%c0_30, %c0_31] : memref<12x8xf32, #tpu.memory_space<vmem>>, vector<1x8xf32>
    tpu.vector_store %arg11[%c0_30, %c0_31], %69 {strides = array<i32>} : memref<12x8xf32, #tpu.memory_space<vmem>>, vector<1x8xf32>,
    %71 = vector.broadcast %54 : i32 to vector<1x8xi32>
    %72 = arith.cmpi eq, %53, %71 : vector<1x8xi32>
    %cst_32 = arith.constant 0.000000e+00 : f32
    %73 = vector.broadcast %cst_32 : f32 to vector<1x8xf32>
    %74 = arith.select %72, %65, %73 : vector<1x8xi1>, vector<1x8xf32>
    %c6_33 = arith.constant 6 : index
    %c0_34 = arith.constant 0 : index
    %75 = vector.load %arg11[%c6_33, %c0_34] : memref<12x8xf32, #tpu.memory_space<vmem>>, vector<1x8xf32>
    tpu.vector_store %arg11[%c6_33, %c0_34], %74 {strides = array<i32>} : memref<12x8xf32, #tpu.memory_space<vmem>>, vector<1x8xf32>,
    %c1 = arith.constant 1 : index
    %76 = memref.load %arg1[%c1] : memref<6xi32, #tpu.memory_space<smem>>
    %c1_35 = arith.constant 1 : index
    %77 = memref.load %arg2[%c1_35] : memref<6xi32, #tpu.memory_space<smem>>
    %78 = arith.index_cast %76 : i32 to index
    %c0_36 = arith.constant 0 : index
    %79 = vector.load %arg9[%78, %c0_36] : memref<8x8xf32, #tpu.memory_space<vmem>>, vector<1x8xf32>
    %c1_37 = arith.constant 1 : index
    %c0_38 = arith.constant 0 : index
    %80 = vector.load %arg10[%c1_37, %c0_38] : memref<12x8xf32, #tpu.memory_space<vmem>>, vector<1x8xf32>
    tpu.vector_store %arg10[%c1_37, %c0_38], %79 {strides = array<i32>} : memref<12x8xf32, #tpu.memory_space<vmem>>, vector<1x8xf32>,
    %81 = arith.index_cast %77 : i32 to index
    %c0_39 = arith.constant 0 : index
    %82 = vector.load %arg9[%81, %c0_39] : memref<8x8xf32, #tpu.memory_space<vmem>>, vector<1x8xf32>
    %c7 = arith.constant 7 : index
    %c0_40 = arith.constant 0 : index
    %83 = vector.load %arg10[%c7, %c0_40] : memref<12x8xf32, #tpu.memory_space<vmem>>, vector<1x8xf32>
    tpu.vector_store %arg10[%c7, %c0_40], %82 {strides = array<i32>} : memref<12x8xf32, #tpu.memory_space<vmem>>, vector<1x8xf32>,
    %84 = arith.index_cast %76 : i32 to index
    %c0_41 = arith.constant 0 : index
    %85 = vector.load %arg7[%84, %c0_41] : memref<8x8xf32, #tpu.memory_space<vmem>>, vector<1x8xf32>
    %86 = arith.index_cast %77 : i32 to index
    %c0_42 = arith.constant 0 : index
    %87 = vector.load %arg7[%86, %c0_42] : memref<8x8xf32, #tpu.memory_space<vmem>>, vector<1x8xf32>
    %88 = vector.broadcast %77 : i32 to vector<1x8xi32>
    %89 = arith.cmpi eq, %53, %88 : vector<1x8xi32>
    %cst_43 = arith.constant 0.000000e+00 : f32
    %90 = vector.broadcast %cst_43 : f32 to vector<1x8xf32>
    %91 = arith.select %89, %85, %90 : vector<1x8xi1>, vector<1x8xf32>
    %c1_44 = arith.constant 1 : index
    %c0_45 = arith.constant 0 : index
    %92 = vector.load %arg11[%c1_44, %c0_45] : memref<12x8xf32, #tpu.memory_space<vmem>>, vector<1x8xf32>
    tpu.vector_store %arg11[%c1_44, %c0_45], %91 {strides = array<i32>} : memref<12x8xf32, #tpu.memory_space<vmem>>, vector<1x8xf32>,
    %93 = vector.broadcast %76 : i32 to vector<1x8xi32>
    %94 = arith.cmpi eq, %53, %93 : vector<1x8xi32>
    %cst_46 = arith.constant 0.000000e+00 : f32
    %95 = vector.broadcast %cst_46 : f32 to vector<1x8xf32>
    %96 = arith.select %94, %87, %95 : vector<1x8xi1>, vector<1x8xf32>
    %c7_47 = arith.constant 7 : index
    %c0_48 = arith.constant 0 : index
    %97 = vector.load %arg11[%c7_47, %c0_48] : memref<12x8xf32, #tpu.memory_space<vmem>>, vector<1x8xf32>
    tpu.vector_store %arg11[%c7_47, %c0_48], %96 {strides = array<i32>} : memref<12x8xf32, #tpu.memory_space<vmem>>, vector<1x8xf32>,
    %c2 = arith.constant 2 : index
    %98 = memref.load %arg1[%c2] : memref<6xi32, #tpu.memory_space<smem>>
    %c2_49 = arith.constant 2 : index
    %99 = memref.load %arg2[%c2_49] : memref<6xi32, #tpu.memory_space<smem>>
    %100 = arith.index_cast %98 : i32 to index
    %c0_50 = arith.constant 0 : index
    %101 = vector.load %arg9[%100, %c0_50] : memref<8x8xf32, #tpu.memory_space<vmem>>, vector<1x8xf32>
    %c2_51 = arith.constant 2 : index
    %c0_52 = arith.constant 0 : index
    %102 = vector.load %arg10[%c2_51, %c0_52] : memref<12x8xf32, #tpu.memory_space<vmem>>, vector<1x8xf32>
    tpu.vector_store %arg10[%c2_51, %c0_52], %101 {strides = array<i32>} : memref<12x8xf32, #tpu.memory_space<vmem>>, vector<1x8xf32>,
    %103 = arith.index_cast %99 : i32 to index
    %c0_53 = arith.constant 0 : index
    %104 = vector.load %arg9[%103, %c0_53] : memref<8x8xf32, #tpu.memory_space<vmem>>, vector<1x8xf32>
    %c8 = arith.constant 8 : index
    %c0_54 = arith.constant 0 : index
    %105 = vector.load %arg10[%c8, %c0_54] : memref<12x8xf32, #tpu.memory_space<vmem>>, vector<1x8xf32>
    tpu.vector_store %arg10[%c8, %c0_54], %104 {strides = array<i32>} : memref<12x8xf32, #tpu.memory_space<vmem>>, vector<1x8xf32>,
    %106 = arith.index_cast %98 : i32 to index
    %c0_55 = arith.constant 0 : index
    %107 = vector.load %arg7[%106, %c0_55] : memref<8x8xf32, #tpu.memory_space<vmem>>, vector<1x8xf32>
    %108 = arith.index_cast %99 : i32 to index
    %c0_56 = arith.constant 0 : index
    %109 = vector.load %arg7[%108, %c0_56] : memref<8x8xf32, #tpu.memory_space<vmem>>, vector<1x8xf32>
    %110 = vector.broadcast %99 : i32 to vector<1x8xi32>
    %111 = arith.cmpi eq, %53, %110 : vector<1x8xi32>
    %cst_57 = arith.constant 0.000000e+00 : f32
    %112 = vector.broadcast %cst_57 : f32 to vector<1x8xf32>
    %113 = arith.select %111, %107, %112 : vector<1x8xi1>, vector<1x8xf32>
    %c2_58 = arith.constant 2 : index
    %c0_59 = arith.constant 0 : index
    %114 = vector.load %arg11[%c2_58, %c0_59] : memref<12x8xf32, #tpu.memory_space<vmem>>, vector<1x8xf32>
    tpu.vector_store %arg11[%c2_58, %c0_59], %113 {strides = array<i32>} : memref<12x8xf32, #tpu.memory_space<vmem>>, vector<1x8xf32>,
    %115 = vector.broadcast %98 : i32 to vector<1x8xi32>
    %116 = arith.cmpi eq, %53, %115 : vector<1x8xi32>
    %cst_60 = arith.constant 0.000000e+00 : f32
    %117 = vector.broadcast %cst_60 : f32 to vector<1x8xf32>
    %118 = arith.select %116, %109, %117 : vector<1x8xi1>, vector<1x8xf32>
    %c8_61 = arith.constant 8 : index
    %c0_62 = arith.constant 0 : index
    %119 = vector.load %arg11[%c8_61, %c0_62] : memref<12x8xf32, #tpu.memory_space<vmem>>, vector<1x8xf32>
    tpu.vector_store %arg11[%c8_61, %c0_62], %118 {strides = array<i32>} : memref<12x8xf32, #tpu.memory_space<vmem>>, vector<1x8xf32>,
    %c3 = arith.constant 3 : index
    %120 = memref.load %arg1[%c3] : memref<6xi32, #tpu.memory_space<smem>>
    %c3_63 = arith.constant 3 : index
    %121 = memref.load %arg2[%c3_63] : memref<6xi32, #tpu.memory_space<smem>>
    %122 = arith.index_cast %120 : i32 to index
    %c0_64 = arith.constant 0 : index
    %123 = vector.load %arg9[%122, %c0_64] : memref<8x8xf32, #tpu.memory_space<vmem>>, vector<1x8xf32>
    %c3_65 = arith.constant 3 : index
    %c0_66 = arith.constant 0 : index
    %124 = vector.load %arg10[%c3_65, %c0_66] : memref<12x8xf32, #tpu.memory_space<vmem>>, vector<1x8xf32>
    tpu.vector_store %arg10[%c3_65, %c0_66], %123 {strides = array<i32>} : memref<12x8xf32, #tpu.memory_space<vmem>>, vector<1x8xf32>,
    %125 = arith.index_cast %121 : i32 to index
    %c0_67 = arith.constant 0 : index
    %126 = vector.load %arg9[%125, %c0_67] : memref<8x8xf32, #tpu.memory_space<vmem>>, vector<1x8xf32>
    %c9 = arith.constant 9 : index
    %c0_68 = arith.constant 0 : index
    %127 = vector.load %arg10[%c9, %c0_68] : memref<12x8xf32, #tpu.memory_space<vmem>>, vector<1x8xf32>
    tpu.vector_store %arg10[%c9, %c0_68], %126 {strides = array<i32>} : memref<12x8xf32, #tpu.memory_space<vmem>>, vector<1x8xf32>,
    %128 = arith.index_cast %120 : i32 to index
    %c0_69 = arith.constant 0 : index
    %129 = vector.load %arg7[%128, %c0_69] : memref<8x8xf32, #tpu.memory_space<vmem>>, vector<1x8xf32>
    %130 = arith.index_cast %121 : i32 to index
    %c0_70 = arith.constant 0 : index
    %131 = vector.load %arg7[%130, %c0_70] : memref<8x8xf32, #tpu.memory_space<vmem>>, vector<1x8xf32>
    %132 = vector.broadcast %121 : i32 to vector<1x8xi32>
    %133 = arith.cmpi eq, %53, %132 : vector<1x8xi32>
    %cst_71 = arith.constant 0.000000e+00 : f32
    %134 = vector.broadcast %cst_71 : f32 to vector<1x8xf32>
    %135 = arith.select %133, %129, %134 : vector<1x8xi1>, vector<1x8xf32>
    %c3_72 = arith.constant 3 : index
    %c0_73 = arith.constant 0 : index
    %136 = vector.load %arg11[%c3_72, %c0_73] : memref<12x8xf32, #tpu.memory_space<vmem>>, vector<1x8xf32>
    tpu.vector_store %arg11[%c3_72, %c0_73], %135 {strides = array<i32>} : memref<12x8xf32, #tpu.memory_space<vmem>>, vector<1x8xf32>,
    %137 = vector.broadcast %120 : i32 to vector<1x8xi32>
    %138 = arith.cmpi eq, %53, %137 : vector<1x8xi32>
    %cst_74 = arith.constant 0.000000e+00 : f32
    %139 = vector.broadcast %cst_74 : f32 to vector<1x8xf32>
    %140 = arith.select %138, %131, %139 : vector<1x8xi1>, vector<1x8xf32>
    %c9_75 = arith.constant 9 : index
    %c0_76 = arith.constant 0 : index
    %141 = vector.load %arg11[%c9_75, %c0_76] : memref<12x8xf32, #tpu.memory_space<vmem>>, vector<1x8xf32>
    tpu.vector_store %arg11[%c9_75, %c0_76], %140 {strides = array<i32>} : memref<12x8xf32, #tpu.memory_space<vmem>>, vector<1x8xf32>,
    %c4 = arith.constant 4 : index
    %142 = memref.load %arg1[%c4] : memref<6xi32, #tpu.memory_space<smem>>
    %c4_77 = arith.constant 4 : index
    %143 = memref.load %arg2[%c4_77] : memref<6xi32, #tpu.memory_space<smem>>
    %144 = arith.index_cast %142 : i32 to index
    %c0_78 = arith.constant 0 : index
    %145 = vector.load %arg9[%144, %c0_78] : memref<8x8xf32, #tpu.memory_space<vmem>>, vector<1x8xf32>
    %c4_79 = arith.constant 4 : index
    %c0_80 = arith.constant 0 : index
    %146 = vector.load %arg10[%c4_79, %c0_80] : memref<12x8xf32, #tpu.memory_space<vmem>>, vector<1x8xf32>
    tpu.vector_store %arg10[%c4_79, %c0_80], %145 {strides = array<i32>} : memref<12x8xf32, #tpu.memory_space<vmem>>, vector<1x8xf32>,
    %147 = arith.index_cast %143 : i32 to index
    %c0_81 = arith.constant 0 : index
    %148 = vector.load %arg9[%147, %c0_81] : memref<8x8xf32, #tpu.memory_space<vmem>>, vector<1x8xf32>
    %c10 = arith.constant 10 : index
    %c0_82 = arith.constant 0 : index
    %149 = vector.load %arg10[%c10, %c0_82] : memref<12x8xf32, #tpu.memory_space<vmem>>, vector<1x8xf32>
    tpu.vector_store %arg10[%c10, %c0_82], %148 {strides = array<i32>} : memref<12x8xf32, #tpu.memory_space<vmem>>, vector<1x8xf32>,
    %150 = arith.index_cast %142 : i32 to index
    %c0_83 = arith.constant 0 : index
    %151 = vector.load %arg7[%150, %c0_83] : memref<8x8xf32, #tpu.memory_space<vmem>>, vector<1x8xf32>
    %152 = arith.index_cast %143 : i32 to index
    %c0_84 = arith.constant 0 : index
    %153 = vector.load %arg7[%152, %c0_84] : memref<8x8xf32, #tpu.memory_space<vmem>>, vector<1x8xf32>
    %154 = vector.broadcast %143 : i32 to vector<1x8xi32>
    %155 = arith.cmpi eq, %53, %154 : vector<1x8xi32>
    %cst_85 = arith.constant 0.000000e+00 : f32
    %156 = vector.broadcast %cst_85 : f32 to vector<1x8xf32>
    %157 = arith.select %155, %151, %156 : vector<1x8xi1>, vector<1x8xf32>
    %c4_86 = arith.constant 4 : index
    %c0_87 = arith.constant 0 : index
    %158 = vector.load %arg11[%c4_86, %c0_87] : memref<12x8xf32, #tpu.memory_space<vmem>>, vector<1x8xf32>
    tpu.vector_store %arg11[%c4_86, %c0_87], %157 {strides = array<i32>} : memref<12x8xf32, #tpu.memory_space<vmem>>, vector<1x8xf32>,
    %159 = vector.broadcast %142 : i32 to vector<1x8xi32>
    %160 = arith.cmpi eq, %53, %159 : vector<1x8xi32>
    %cst_88 = arith.constant 0.000000e+00 : f32
    %161 = vector.broadcast %cst_88 : f32 to vector<1x8xf32>
    %162 = arith.select %160, %153, %161 : vector<1x8xi1>, vector<1x8xf32>
    %c10_89 = arith.constant 10 : index
    %c0_90 = arith.constant 0 : index
    %163 = vector.load %arg11[%c10_89, %c0_90] : memref<12x8xf32, #tpu.memory_space<vmem>>, vector<1x8xf32>
    tpu.vector_store %arg11[%c10_89, %c0_90], %162 {strides = array<i32>} : memref<12x8xf32, #tpu.memory_space<vmem>>, vector<1x8xf32>,
    %c5 = arith.constant 5 : index
    %164 = memref.load %arg1[%c5] : memref<6xi32, #tpu.memory_space<smem>>
    %c5_91 = arith.constant 5 : index
    %165 = memref.load %arg2[%c5_91] : memref<6xi32, #tpu.memory_space<smem>>
    %166 = arith.index_cast %164 : i32 to index
    %c0_92 = arith.constant 0 : index
    %167 = vector.load %arg9[%166, %c0_92] : memref<8x8xf32, #tpu.memory_space<vmem>>, vector<1x8xf32>
    %c5_93 = arith.constant 5 : index
    %c0_94 = arith.constant 0 : index
    %168 = vector.load %arg10[%c5_93, %c0_94] : memref<12x8xf32, #tpu.memory_space<vmem>>, vector<1x8xf32>
    tpu.vector_store %arg10[%c5_93, %c0_94], %167 {strides = array<i32>} : memref<12x8xf32, #tpu.memory_space<vmem>>, vector<1x8xf32>,
    %169 = arith.index_cast %165 : i32 to index
    %c0_95 = arith.constant 0 : index
    %170 = vector.load %arg9[%169, %c0_95] : memref<8x8xf32, #tpu.memory_space<vmem>>, vector<1x8xf32>
    %c11 = arith.constant 11 : index
    %c0_96 = arith.constant 0 : index
    %171 = vector.load %arg10[%c11, %c0_96] : memref<12x8xf32, #tpu.memory_space<vmem>>, vector<1x8xf32>
    tpu.vector_store %arg10[%c11, %c0_96], %170 {strides = array<i32>} : memref<12x8xf32, #tpu.memory_space<vmem>>, vector<1x8xf32>,
    %172 = arith.index_cast %164 : i32 to index
    %c0_97 = arith.constant 0 : index
    %173 = vector.load %arg7[%172, %c0_97] : memref<8x8xf32, #tpu.memory_space<vmem>>, vector<1x8xf32>
    %174 = arith.index_cast %165 : i32 to index
    %c0_98 = arith.constant 0 : index
    %175 = vector.load %arg7[%174, %c0_98] : memref<8x8xf32, #tpu.memory_space<vmem>>, vector<1x8xf32>
    %176 = vector.broadcast %165 : i32 to vector<1x8xi32>
    %177 = arith.cmpi eq, %53, %176 : vector<1x8xi32>
    %cst_99 = arith.constant 0.000000e+00 : f32
    %178 = vector.broadcast %cst_99 : f32 to vector<1x8xf32>
    %179 = arith.select %177, %173, %178 : vector<1x8xi1>, vector<1x8xf32>
    %c5_100 = arith.constant 5 : index
    %c0_101 = arith.constant 0 : index
    %180 = vector.load %arg11[%c5_100, %c0_101] : memref<12x8xf32, #tpu.memory_space<vmem>>, vector<1x8xf32>
    tpu.vector_store %arg11[%c5_100, %c0_101], %179 {strides = array<i32>} : memref<12x8xf32, #tpu.memory_space<vmem>>, vector<1x8xf32>,
    %181 = vector.broadcast %164 : i32 to vector<1x8xi32>
    %182 = arith.cmpi eq, %53, %181 : vector<1x8xi32>
    %cst_102 = arith.constant 0.000000e+00 : f32
    %183 = vector.broadcast %cst_102 : f32 to vector<1x8xf32>
    %184 = arith.select %182, %175, %183 : vector<1x8xi1>, vector<1x8xf32>
    %c11_103 = arith.constant 11 : index
    %c0_104 = arith.constant 0 : index
    %185 = vector.load %arg11[%c11_103, %c0_104] : memref<12x8xf32, #tpu.memory_space<vmem>>, vector<1x8xf32>
    tpu.vector_store %arg11[%c11_103, %c0_104], %184 {strides = array<i32>} : memref<12x8xf32, #tpu.memory_space<vmem>>, vector<1x8xf32>,
    %c0_105 = arith.constant 0 : index
    %c0_106 = arith.constant 0 : index
    %186 = vector.load %arg10[%c0_105, %c0_106] : memref<12x8xf32, #tpu.memory_space<vmem>>, vector<12x8xf32>
    %c0_107 = arith.constant 0 : index
    %c0_108 = arith.constant 0 : index
    %187 = vector.load %arg11[%c0_107, %c0_108] : memref<12x8xf32, #tpu.memory_space<vmem>>, vector<12x8xf32>
    %cst_109 = arith.constant dense<0.000000e+00> : vector<12xf32>
    %188 = vector.multi_reduction <add>, %187, %cst_109 [1] : vector<12x8xf32> to vector<12xf32>
    %189 = vector.shape_cast %188 : vector<12xf32> to vector<12x1xf32>
    %cst_110 = arith.constant 5.000000e+00 : f32
    %190 = vector.broadcast %cst_110 : f32 to vector<12x1xf32>
    %191 = arith.mulf %189, %190 : vector<12x1xf32>
    %192 = math.exp %191 : vector<12x1xf32>
    %cst_111 = arith.constant 0.000000e+00 : f32
    %193 = vector.broadcast %cst_111 : f32 to vector<12x8xf32>
    %194 = vector.extract_strided_slice %186 {offsets = [0, 0], sizes = [12, 1], strides = [1, 1]} : vector<12x8xf32> to vector<12x1xf32>
    %195 = vector.broadcast %194 : vector<12x1xf32> to vector<12x8xf32>
    %196 = arith.cmpf olt, %195, %186 : vector<12x8xf32>
    %197 = arith.extui %196 : vector<12x8xi1> to vector<12x8xi32>
    %198 = arith.sitofp %197 : vector<12x8xi32> to vector<12x8xf32>
    %199 = arith.addf %193, %198 : vector<12x8xf32>
    %200 = vector.extract_strided_slice %186 {offsets = [0, 1], sizes = [12, 1], strides = [1, 1]} : vector<12x8xf32> to vector<12x1xf32>
    %201 = vector.broadcast %200 : vector<12x1xf32> to vector<12x8xf32>
    %202 = arith.cmpf olt, %201, %186 : vector<12x8xf32>
    %203 = arith.extui %202 : vector<12x8xi1> to vector<12x8xi32>
    %204 = arith.sitofp %203 : vector<12x8xi32> to vector<12x8xf32>
    %205 = arith.addf %199, %204 : vector<12x8xf32>
    %206 = vector.extract_strided_slice %186 {offsets = [0, 2], sizes = [12, 1], strides = [1, 1]} : vector<12x8xf32> to vector<12x1xf32>
    %207 = vector.broadcast %206 : vector<12x1xf32> to vector<12x8xf32>
    %208 = arith.cmpf olt, %207, %186 : vector<12x8xf32>
    %209 = arith.extui %208 : vector<12x8xi1> to vector<12x8xi32>
    %210 = arith.sitofp %209 : vector<12x8xi32> to vector<12x8xf32>
    %211 = arith.addf %205, %210 : vector<12x8xf32>
    %212 = vector.extract_strided_slice %186 {offsets = [0, 3], sizes = [12, 1], strides = [1, 1]} : vector<12x8xf32> to vector<12x1xf32>
    %213 = vector.broadcast %212 : vector<12x1xf32> to vector<12x8xf32>
    %214 = arith.cmpf olt, %213, %186 : vector<12x8xf32>
    %215 = arith.extui %214 : vector<12x8xi1> to vector<12x8xi32>
    %216 = arith.sitofp %215 : vector<12x8xi32> to vector<12x8xf32>
    %217 = arith.addf %211, %216 : vector<12x8xf32>
    %218 = vector.extract_strided_slice %186 {offsets = [0, 4], sizes = [12, 1], strides = [1, 1]} : vector<12x8xf32> to vector<12x1xf32>
    %219 = vector.broadcast %218 : vector<12x1xf32> to vector<12x8xf32>
    %220 = arith.cmpf olt, %219, %186 : vector<12x8xf32>
    %221 = arith.extui %220 : vector<12x8xi1> to vector<12x8xi32>
    %222 = arith.sitofp %221 : vector<12x8xi32> to vector<12x8xf32>
    %223 = arith.addf %217, %222 : vector<12x8xf32>
    %224 = vector.extract_strided_slice %186 {offsets = [0, 5], sizes = [12, 1], strides = [1, 1]} : vector<12x8xf32> to vector<12x1xf32>
    %225 = vector.broadcast %224 : vector<12x1xf32> to vector<12x8xf32>
    %226 = arith.cmpf olt, %225, %186 : vector<12x8xf32>
    %227 = arith.extui %226 : vector<12x8xi1> to vector<12x8xi32>
    %228 = arith.sitofp %227 : vector<12x8xi32> to vector<12x8xf32>
    %229 = arith.addf %223, %228 : vector<12x8xf32>
    %230 = vector.extract_strided_slice %186 {offsets = [0, 6], sizes = [12, 1], strides = [1, 1]} : vector<12x8xf32> to vector<12x1xf32>
    %231 = vector.broadcast %230 : vector<12x1xf32> to vector<12x8xf32>
    %232 = arith.cmpf olt, %231, %186 : vector<12x8xf32>
    %233 = arith.extui %232 : vector<12x8xi1> to vector<12x8xi32>
    %234 = arith.sitofp %233 : vector<12x8xi32> to vector<12x8xf32>
    %235 = arith.addf %229, %234 : vector<12x8xf32>
    %236 = vector.extract_strided_slice %186 {offsets = [0, 7], sizes = [12, 1], strides = [1, 1]} : vector<12x8xf32> to vector<12x1xf32>
    %237 = vector.broadcast %236 : vector<12x1xf32> to vector<12x8xf32>
    %238 = arith.cmpf olt, %237, %186 : vector<12x8xf32>
    %239 = arith.extui %238 : vector<12x8xi1> to vector<12x8xi32>
    %240 = arith.sitofp %239 : vector<12x8xi32> to vector<12x8xf32>
    %241 = arith.addf %235, %240 : vector<12x8xf32>
    %cst_112 = arith.constant 5.000000e+00 : f32
    %242 = vector.broadcast %cst_112 : f32 to vector<12x8xf32>
    %243 = arith.cmpf ole, %241, %242 : vector<12x8xf32>
    %cst_113 = arith.constant -1.000000e+00 : f32
    %244 = vector.broadcast %cst_113 : f32 to vector<12x8xf32>
    %245 = arith.select %243, %186, %244 : vector<12x8xi1>, vector<12x8xf32>
    %cst_114 = arith.constant dense<0xFF800000> : vector<12xf32>
    %246 = vector.multi_reduction <maximumf>, %245, %cst_114 [1] : vector<12x8xf32> to vector<12xf32>
    %247 = vector.shape_cast %246 : vector<12xf32> to vector<12x1xf32>
    %cst_115 = arith.constant 6.000000e+00 : f32
    %248 = vector.broadcast %cst_115 : f32 to vector<12x8xf32>
    %249 = arith.cmpf ole, %241, %248 : vector<12x8xf32>
    %cst_116 = arith.constant -1.000000e+00 : f32
    %250 = vector.broadcast %cst_116 : f32 to vector<12x8xf32>
    %251 = arith.select %249, %186, %250 : vector<12x8xi1>, vector<12x8xf32>
    %cst_117 = arith.constant dense<0xFF800000> : vector<12xf32>
    %252 = vector.multi_reduction <maximumf>, %251, %cst_117 [1] : vector<12x8xf32> to vector<12xf32>
    %253 = vector.shape_cast %252 : vector<12xf32> to vector<12x1xf32>
    %254 = arith.subf %253, %247 : vector<12x1xf32>
    %cst_118 = arith.constant 6.000000e-01 : f32
    %255 = vector.broadcast %cst_118 : f32 to vector<12x1xf32>
    %256 = arith.mulf %255, %254 : vector<12x1xf32>
    %257 = arith.addf %247, %256 : vector<12x1xf32>
    %258 = vector.broadcast %257 : vector<12x1xf32> to vector<12x8xf32>
    %259 = arith.cmpf oge, %186, %258 : vector<12x8xf32>
    %cst_119 = arith.constant 0.000000e+00 : f32
    %260 = vector.broadcast %cst_119 : f32 to vector<12x8xf32>
    %261 = arith.select %259, %186, %260 : vector<12x8xi1>, vector<12x8xf32>
    %cst_120 = arith.constant dense<0.000000e+00> : vector<12xf32>
    %262 = vector.multi_reduction <add>, %261, %cst_120 [1] : vector<12x8xf32> to vector<12xf32>
    %263 = vector.shape_cast %262 : vector<12xf32> to vector<12x1xf32>
    %264 = arith.addf %192, %263 : vector<12x1xf32>
    %265 = arith.divf %192, %264 : vector<12x1xf32>
    %266 = math.log %265 : vector<12x1xf32>
    %cst_121 = arith.constant 0.000000e+00 : f32
    %267 = vector.broadcast %cst_121 : f32 to vector<12x1xf32>
    %268 = arith.subf %267, %266 : vector<12x1xf32>
    %cst_122 = arith.constant dense<0.000000e+00> : vector<1xf32>
    %269 = vector.multi_reduction <add>, %268, %cst_122 [0] : vector<12x1xf32> to vector<1xf32>
    %270 = vector.shape_cast %269 : vector<1xf32> to vector<1x1xf32>
    %cst_123 = arith.constant 1.200000e+01 : f32
    %271 = vector.broadcast %cst_123 : f32 to vector<1x1xf32>
    %272 = arith.divf %270, %271 : vector<1x1xf32>
    %c0_124 = arith.constant 0 : index
    %c0_125 = arith.constant 0 : index
    %273 = vector.load %arg8[%c0_124, %c0_125] : memref<1x1xf32, #tpu.memory_space<vmem>>, vector<1x1xf32>
    tpu.vector_store %arg8[%c0_124, %c0_125], %272 {strides = array<i32>} : memref<1x1xf32, #tpu.memory_space<vmem>>, vector<1x1xf32>,
    return
  }
  func.func @transform_0(%arg0: i32, %arg1: memref<6xi32, #tpu.memory_space<smem>>, %arg2: memref<6xi32, #tpu.memory_space<smem>>) -> (i32, i32) {
    %c0_i32 = arith.constant 0 : i32
    %c0_i32_0 = arith.constant 0 : i32
    %c0_i32_1 = arith.constant 0 : i32
    return %c0_i32, %c0_i32_0 : i32, i32
  }
  func.func @transform_1(%arg0: i32, %arg1: memref<6xi32, #tpu.memory_space<smem>>, %arg2: memref<6xi32, #tpu.memory_space<smem>>) -> (i32, i32) {
    %c0_i32 = arith.constant 0 : i32
    %c0_i32_0 = arith.constant 0 : i32
    %c0_i32_1 = arith.constant 0 : i32
    return %c0_i32, %c0_i32_0 : i32, i32
  }
  func.func @transform_2(%arg0: i32, %arg1: memref<6xi32, #tpu.memory_space<smem>>, %arg2: memref<6xi32, #tpu.memory_space<smem>>) -> (i32, i32) {
    %c0_i32 = arith.constant 0 : i32
    %c0_i32_0 = arith.constant 0 : i32
    %c0_i32_1 = arith.constant 0 : i32
    return %c0_i32, %c0_i32_0 : i32, i32
  }
  func.func @transform_3(%arg0: i32, %arg1: memref<6xi32, #tpu.memory_space<smem>>, %arg2: memref<6xi32, #tpu.memory_space<smem>>) -> (i32, i32) {
    %c0_i32 = arith.constant 0 : i32
    %c0_i32_0 = arith.constant 0 : i32
    %c0_i32_1 = arith.constant 0 : i32
    return %c0_i32, %c0_i32_0 : i32, i32
  }
  func.func @transform_4(%arg0: i32, %arg1: memref<6xi32, #tpu.memory_space<smem>>, %arg2: memref<6xi32, #tpu.memory_space<smem>>) -> (i32, i32) {
    %c0_i32 = arith.constant 0 : i32
    %c0_i32_0 = arith.constant 0 : i32
    %c0_i32_1 = arith.constant 0 : i32
    return %c0_i32, %c0_i32_0 : i32, i32
  }
  func.func @transform_5(%arg0: i32, %arg1: memref<6xi32, #tpu.memory_space<smem>>, %arg2: memref<6xi32, #tpu.memory_space<smem>>) -> (i32, i32) {
    %c0_i32 = arith.constant 0 : i32
    %c0_i32_0 = arith.constant 0 : i32
    %c0_i32_1 = arith.constant 0 : i32
    return %c0_i32, %c0_i32_0 : i32, i32
  }
}

</mosaic_0001>

<llo_original>
// kernel: tpu_custom_call.1
$region0: #{tpu_custom_call.1}
  #allocation0 [shape = 'u32[]', space=smem, size = 0x4, offset = 0x4, fixed_abs, tag = 'smem constant byte address 0x4 - core index']
  #allocation1 [shape = 'u32[144,128]{1,0:T(1,128)}', space=vmem, size = 0x12000, scoped, tag = 'internal scratch']
  #allocation2 [shape = 'f32[8,8]{1,0:T(8,128)}', space=vmem, size = 0x1000, scoped, tag = 'scratch operand']
  #allocation3 [shape = 'f32[12,8]{1,0:T(8,128)}', space=vmem, size = 0x2000, scoped, tag = 'scratch operand']
  #allocation4 [shape = 'f32[12,8]{1,0:T(8,128)}', space=vmem, size = 0x2000, scoped, tag = 'scratch operand']
  #allocation5 [shape = 's32[1]{0}', space=sflag, size = 0x4, scoped, tag = 'scoped memory for tpu_custom_call.1']
  #allocation6 [shape = 'u8[512]{0}', space=smem, size = 0x200, scoped, tag = 'prefetched SMEM operand 0']
  #allocation7 [shape = 'u8[512]{0}', space=smem, size = 0x200, scoped, tag = 'prefetched SMEM operand 1']
  %s0 = inlined_call_operand.hbm [shape: s32[6], index: 0, kind: input, shape index: {}]
  %s1 = inlined_call_operand.vmem [shape: s32[6], index: 1, kind: input, shape index: {}]
  %s2 = inlined_call_operand.hbm [shape: f32[8,32], index: 2, kind: input, shape index: {}]
  %s3 = inlined_call_operand.vmem [shape: f32[8,32], index: 3, kind: input, shape index: {}]
  %s4 = inlined_call_operand.hbm [shape: f32[8,32], index: 4, kind: input, shape index: {}]
  %s5 = inlined_call_operand.vmem [shape: s32[8,8], index: 5, kind: input, shape index: {}]
  %s6 = inlined_call_operand.hbm [shape: f32[8,8], index: 6, kind: output, shape index: {0}]
  %s7 = inlined_call_operand.hbm [shape: f32[1,1], index: 7, kind: output, shape index: {1}]
  %8 = xla_tuple %s6, %s7
  %s9 = sld [smem:[#allocation0]]
  $region42: #{tpu_custom_call.1} parent=0
    _
  %s11 = ssub.s32 1, %s9
  %s12 = scalar_select 0, %s11, %s9
  %14 = dma.hbm_to_smem %s0, 16, [#allocation6], [#allocation5]
  %s15 = sshll.u32 %s1, 4
  %s16 = int_to_ptr.vmem [resolvable:$true] %s15
  %18 = dma.vmem_to_smem %s16, 16, [#allocation7], [#allocation5]
  %19 = dma.done [#allocation5], 32
  %20 = sfence
  $region1: #{tpu_custom_call.1} parent=0
    #allocation8 [shape = 'u8[4096]{0}', space=vmem, size = 0x1000, scoped, tag = 'input window, operand 2, single buffered']
    #allocation9 [shape = 's32[1]{0}', space=sflag, size = 0x4, scoped, tag = 'scoped memory for tpu_custom_call.1']
    #allocation10 [shape = 's32[1]{0}', space=sflag, size = 0x4, scoped, tag = 'scoped memory for tpu_custom_call.1']
    #allocation11 [shape = 'u8[4096]{0}', space=vmem, size = 0x1000, scoped, tag = 'input window, operand 4, single buffered']
    #allocation12 [shape = 's32[1]{0}', space=sflag, size = 0x4, scoped, tag = 'scoped memory for tpu_custom_call.1']
    #allocation13 [shape = 'u8[4096]{0}', space=vmem, size = 0x1000, scoped, tag = 'output window, operand 0, single buffered']
    #allocation14 [shape = 'u8[512]{0}', space=vmem, size = 0x400, scoped, tag = 'output window, operand 1, single buffered']
    #allocation15 [shape = 's32[1]{0}', space=sflag, size = 0x4, scoped, tag = 'scoped memory for tpu_custom_call.1']
    %21 = vsyncpa [#allocation9], 0
    %22 = vsyncpa [#allocation12], 0
    %23 = vsyncpa [#allocation10], 0
    %24 = vsyncpa [#allocation15], 0
    // Predicated region
    $region2: #{tpu_custom_call.1} parent=1 // pred_check
      _
    $region3: #{tpu_custom_call.1} parent=1 // pred_check_branch
      %26 = sbr.rel (0) target = $region5
    $region4: #{tpu_custom_call.1} parent=1 // pred_region
      %s28 = ssub.s32 128, 128
      %29 = vsyncadd [#allocation9], %s28
      %s31 = sshll.u32 [#allocation8], 4
      %s32 = int_to_ptr.vmem [resolvable:$true] %s31
      %34 = dma.hbm_to_vmem [thread:$0]  %s2, 128, %s32, [#allocation9]
    $region5: #{tpu_custom_call.1} parent=1 // pred_fallthru
      _
    // Predicated region
    $region6: #{tpu_custom_call.1} parent=1 // pred_check
      _
    $region7: #{tpu_custom_call.1} parent=1 // pred_check_branch
      %36 = sbr.rel (0) target = $region9
    $region8: #{tpu_custom_call.1} parent=1 // pred_region
      _
    $region9: #{tpu_custom_call.1} parent=1 // pred_fallthru
      _
    // Predicated region
    $region10: #{tpu_custom_call.1} parent=1 // pred_check
      _
    $region11: #{tpu_custom_call.1} parent=1 // pred_check_branch
      %38 = sbr.rel (0) target = $region13
    $region12: #{tpu_custom_call.1} parent=1 // pred_region
      %s40 = ssub.s32 128, 128
      %41 = vsyncadd [#allocation12], %s40
      %s43 = sshll.u32 [#allocation11], 4
      %s44 = int_to_ptr.vmem [resolvable:$true] %s43
      %46 = dma.hbm_to_vmem [thread:$0]  %s4, 128, %s44, [#allocation12]
    $region13: #{tpu_custom_call.1} parent=1 // pred_fallthru
      _
    // Predicated region
    $region14: #{tpu_custom_call.1} parent=1 // pred_check
      _
    $region15: #{tpu_custom_call.1} parent=1 // pred_check_branch
      %48 = sbr.rel (0) target = $region17
    $region16: #{tpu_custom_call.1} parent=1 // pred_region
      _
    $region17: #{tpu_custom_call.1} parent=1 // pred_fallthru
      _
    // Predicated region
    $region18: #{tpu_custom_call.1} parent=1 // pred_check
      _
    $region19: #{tpu_custom_call.1} parent=1 // pred_check_branch
      %50 = sbr.rel (0) target = $region21
    $region20: #{tpu_custom_call.1} parent=1 // pred_region
      %51 = dma.done [#allocation9], 128
    $region21: #{tpu_custom_call.1} parent=1 // pred_fallthru
      _
    // Predicated region
    $region22: #{tpu_custom_call.1} parent=1 // pred_check
      _
    $region23: #{tpu_custom_call.1} parent=1 // pred_check_branch
      %53 = sbr.rel (0) target = $region25
    $region24: #{tpu_custom_call.1} parent=1 // pred_region
      %54 = dma.done [#allocation12], 128
    $region25: #{tpu_custom_call.1} parent=1 // pred_fallthru
      _
    %v55 = vlaneseq
    %v56 = vshrl.u32 %v55, 7
    %v57 = vlaneseq
    %v58 = vand.u32 %v57, 127
    %vm59 = vcmp.eq.s32.totalorder %v56, %v58
    %v60 = vld [vmem:[%s3] sm:$0xff]
    %vm61 = vcmask 261120
    %v63 = vsel %vm61, %v60, 0
    %65 = vmatprep.subr.mxu0 0.0
    %66 = vmatpush1.xpose.msra.mxu0 %v63
    %67 = vmatprep.subr.mxu0 0.0
    %68 = vmatpush1.xpose.msra.mxu0 0.0
    %69 = vmatprep.subr.mxu0 0.0
    %70 = vmatpush1.xpose.msra.mxu0 0.0
    %71 = vmatprep.subr.mxu0 0.0
    %72 = vmatpush1.xpose.msra.mxu0 0.0
    %73 = vmatprep.subr.mxu0 0.0
    %74 = vmatpush1.xpose.msra.mxu0 0.0
    %75 = vmatprep.subr.mxu0 0.0
    %76 = vmatpush1.xpose.msra.mxu0 0.0
    %77 = vmatprep.subr.mxu0 0.0
    %78 = vmatpush1.xpose.msra.mxu0 0.0
    %79 = vmatprep.subr.mxu0 0.0
    %80 = vmatpush1.xpose.msra.mxu0 0.0
    %81 = vmatprep.subr.mxu0 0.0
    %82 = vmatpush1.xpose.msra.mxu0 0.0
    %83 = vmatprep.subr.mxu0 0.0
    %84 = vmatpush1.xpose.msra.mxu0 0.0
    %85 = vmatprep.subr.mxu0 0.0
    %86 = vmatpush1.xpose.msra.mxu0 0.0
    %87 = vmatprep.subr.mxu0 0.0
    %88 = vmatpush1.xpose.msra.mxu0 0.0
    %89 = vmatprep.subr.mxu0 0.0
    %90 = vmatpush1.xpose.msra.mxu0 0.0
    %91 = vmatprep.subr.mxu0 0.0
    %92 = vmatpush1.xpose.msra.mxu0 0.0
    %93 = vmatprep.subr.mxu0 0.0
    %94 = vmatpush1.xpose.msra.mxu0 0.0
    %95 = vmatprep.subr.mxu0 0.0
    %96 = vmatpush1.xpose.msra.mxu0 0.0
    %97 = vmatprep.subr.mxu0 0.0
    %98 = vmatpush1.xpose.msra.mxu0 0.0
    %99 = vmatprep.subr.mxu0 0.0
    %100 = vmatpush1.xpose.msra.mxu0 0.0
    %101 = vmatprep.subr.mxu0 0.0
    %102 = vmatpush1.xpose.msra.mxu0 0.0
    %103 = vmatprep.subr.mxu0 0.0
    %104 = vmatpush1.xpose.msra.mxu0 0.0
    %105 = vmatprep.subr.mxu0 0.0
    %106 = vmatpush1.xpose.msra.mxu0 0.0
    %107 = vmatprep.subr.mxu0 0.0
    %108 = vmatpush1.xpose.msra.mxu0 0.0
    %109 = vmatprep.subr.mxu0 0.0
    %110 = vmatpush1.xpose.msra.mxu0 0.0
    %111 = vmatprep.subr.mxu0 0.0
    %112 = vmatpush1.xpose.msra.mxu0 0.0
    %113 = vmatprep.subr.mxu0 0.0
    %114 = vmatpush1.xpose.msra.mxu0 0.0
    %115 = vmatprep.subr.mxu0 0.0
    %116 = vmatpush1.xpose.msra.mxu0 0.0
    %117 = vmatprep.subr.mxu0 0.0
    %118 = vmatpush1.xpose.msra.mxu0 0.0
    %119 = vmatprep.subr.mxu0 0.0
    %120 = vmatpush1.xpose.msra.mxu0 0.0
    %121 = vmatprep.subr.mxu0 0.0
    %122 = vmatpush1.xpose.msra.mxu0 0.0
    %123 = vmatprep.subr.mxu0 0.0
    %124 = vmatpush1.xpose.msra.mxu0 0.0
    %125 = vmatprep.subr.mxu0 0.0
    %126 = vmatpush1.xpose.msra.mxu0 0.0
    %127 = vmatprep.subr.mxu0 0.0
    %128 = vmatpush1.xpose.msra.mxu0 0.0
    %129 = vmatprep.mubr.f32.mxu0 0.0
    %130 = vmatmul.mubr.f32.gmra.mrb[0].mxu0 %v63
    %v131 = vpop.f32.mrb[0].mxu0
    %v132 = vadd.f32 0.0, %v131
    %v133 = vpop.f32.mrb[0].mxu0
    %134 = vdwg.mxu0
    %v135 = vmul.f32 %v60, %v60
    %v136 = vsel %vm61, %v135, 0.0
    %137 = vadd.xlane.f32.xlu0 %v136
    %v138 = vpop.xlane.xlu0 %137
    %139 = vxpose.xlu0.b32.start [1/16] %v138, 128
    %140 = vxpose.xlu0.b32.cont [2/16] 0.0, 128
    %141 = vxpose.xlu0.b32.cont [3/16] 0.0, 128
    %142 = vxpose.xlu0.b32.cont [4/16] 0.0, 128
    %143 = vxpose.xlu0.b32.cont [5/16] 0.0, 128
    %144 = vxpose.xlu0.b32.cont [6/16] 0.0, 128
    %145 = vxpose.xlu0.b32.cont [7/16] 0.0, 128
    %146 = vxpose.xlu0.b32.cont [8/16] 0.0, 128
    %147 = vxpose.xlu0.b32.cont [9/16] 0.0, 128
    %148 = vxpose.xlu0.b32.cont [10/16] 0.0, 128
    %149 = vxpose.xlu0.b32.cont [11/16] 0.0, 128
    %150 = vxpose.xlu0.b32.cont [12/16] 0.0, 128
    %151 = vxpose.xlu0.b32.cont [13/16] 0.0, 128
    %152 = vxpose.xlu0.b32.cont [14/16] 0.0, 128
    %153 = vxpose.xlu0.b32.cont [15/16] 0.0, 128
    %154 = vxpose.xlu0.b32.end [16/16] 0.0, 128
    %v155 = vpop.trf.xlu0
    %v156 = vpop.trf.xlu0
    %v157 = vpop.trf.xlu0
    %v158 = vpop.trf.xlu0
    %v159 = vpop.trf.xlu0
    %v160 = vpop.trf.xlu0
    %v161 = vpop.trf.xlu0
    %v162 = vpop.trf.xlu0
    %v163 = vpop.trf.xlu0
    %v164 = vpop.trf.xlu0
    %v165 = vpop.trf.xlu0
    %v166 = vpop.trf.xlu0
    %v167 = vpop.trf.xlu0
    %v168 = vpop.trf.xlu0
    %v169 = vpop.trf.xlu0
    %v170 = vpop.trf.xlu0
    %v171 = vlaneseq
    %v172 = vshrl.u32 %v171, 7
    %v173 = vsub.s32 0, %v172
    %v174 = vrot.slane %v155, %v173
    %v175 = vmul.f32 %v138, %v174
    %v176 = vmax.f32 %v175, 1e-16
    %v177 = vrsqrt.pop %v176
    %v178 = vmul.f32 %v132, %v177
    %v179 = vld [vmem:[#allocation11] sm:$0xff]
    %v181 = vsel %vm61, %v179, 0
    %183 = vmatprep.subr.mxu0 0.0
    %184 = vmatpush1.xpose.msra.mxu0 %v181
    %185 = vmatprep.subr.mxu0 0.0
    %186 = vmatpush1.xpose.msra.mxu0 0.0
    %187 = vmatprep.subr.mxu0 0.0
    %188 = vmatpush1.xpose.msra.mxu0 0.0
    %189 = vmatprep.subr.mxu0 0.0
    %190 = vmatpush1.xpose.msra.mxu0 0.0
    %191 = vmatprep.subr.mxu0 0.0
    %192 = vmatpush1.xpose.msra.mxu0 0.0
    %193 = vmatprep.subr.mxu0 0.0
    %194 = vmatpush1.xpose.msra.mxu0 0.0
    %195 = vmatprep.subr.mxu0 0.0
    %196 = vmatpush1.xpose.msra.mxu0 0.0
    %197 = vmatprep.subr.mxu0 0.0
    %198 = vmatpush1.xpose.msra.mxu0 0.0
    %199 = vmatprep.subr.mxu0 0.0
    %200 = vmatpush1.xpose.msra.mxu0 0.0
    %201 = vmatprep.subr.mxu0 0.0
    %202 = vmatpush1.xpose.msra.mxu0 0.0
    %203 = vmatprep.subr.mxu0 0.0
    %204 = vmatpush1.xpose.msra.mxu0 0.0
    %205 = vmatprep.subr.mxu0 0.0
    %206 = vmatpush1.xpose.msra.mxu0 0.0
    %207 = vmatprep.subr.mxu0 0.0
    %208 = vmatpush1.xpose.msra.mxu0 0.0
    %209 = vmatprep.subr.mxu0 0.0
    %210 = vmatpush1.xpose.msra.mxu0 0.0
    %211 = vmatprep.subr.mxu0 0.0
    %212 = vmatpush1.xpose.msra.mxu0 0.0
    %213 = vmatprep.subr.mxu0 0.0
    %214 = vmatpush1.xpose.msra.mxu0 0.0
    %215 = vmatprep.subr.mxu0 0.0
    %216 = vmatpush1.xpose.msra.mxu0 0.0
    %217 = vmatprep.subr.mxu0 0.0
    %218 = vmatpush1.xpose.msra.mxu0 0.0
    %219 = vmatprep.subr.mxu0 0.0
    %220 = vmatpush1.xpose.msra.mxu0 0.0
    %221 = vmatprep.subr.mxu0 0.0
    %222 = vmatpush1.xpose.msra.mxu0 0.0
    %223 = vmatprep.subr.mxu0 0.0
    %224 = vmatpush1.xpose.msra.mxu0 0.0
    %225 = vmatprep.subr.mxu0 0.0
    %226 = vmatpush1.xpose.msra.mxu0 0.0
    %227 = vmatprep.subr.mxu0 0.0
    %228 = vmatpush1.xpose.msra.mxu0 0.0
    %229 = vmatprep.subr.mxu0 0.0
    %230 = vmatpush1.xpose.msra.mxu0 0.0
    %231 = vmatprep.subr.mxu0 0.0
    %232 = vmatpush1.xpose.msra.mxu0 0.0
    %233 = vmatprep.subr.mxu0 0.0
    %234 = vmatpush1.xpose.msra.mxu0 0.0
    %235 = vmatprep.subr.mxu0 0.0
    %236 = vmatpush1.xpose.msra.mxu0 0.0
    %237 = vmatprep.subr.mxu0 0.0
    %238 = vmatpush1.xpose.msra.mxu0 0.0
    %239 = vmatprep.subr.mxu0 0.0
    %240 = vmatpush1.xpose.msra.mxu0 0.0
    %241 = vmatprep.subr.mxu0 0.0
    %242 = vmatpush1.xpose.msra.mxu0 0.0
    %243 = vmatprep.subr.mxu0 0.0
    %244 = vmatpush1.xpose.msra.mxu0 0.0
    %245 = vmatprep.subr.mxu0 0.0
    %246 = vmatpush1.xpose.msra.mxu0 0.0
    %247 = vmatprep.mubr.f32.mxu0 0.0
    %248 = vmatmul.mubr.f32.gmra.mrb[0].mxu0 %v181
    %v249 = vpop.f32.mrb[0].mxu0
    %v250 = vadd.f32 0.0, %v249
    %v251 = vpop.f32.mrb[0].mxu0
    %252 = vdwg.mxu0
    %v253 = vmul.f32 %v179, %v179
    %v254 = vsel %vm61, %v253, 0.0
    %255 = vadd.xlane.f32.xlu0 %v254
    %v256 = vpop.xlane.xlu0 %255
    %257 = vxpose.xlu0.b32.start [1/16] %v256, 128
    %258 = vxpose.xlu0.b32.cont [2/16] 0.0, 128
    %259 = vxpose.xlu0.b32.cont [3/16] 0.0, 128
    %260 = vxpose.xlu0.b32.cont [4/16] 0.0, 128
    %261 = vxpose.xlu0.b32.cont [5/16] 0.0, 128
    %262 = vxpose.xlu0.b32.cont [6/16] 0.0, 128
    %263 = vxpose.xlu0.b32.cont [7/16] 0.0, 128
    %264 = vxpose.xlu0.b32.cont [8/16] 0.0, 128
    %265 = vxpose.xlu0.b32.cont [9/16] 0.0, 128
    %266 = vxpose.xlu0.b32.cont [10/16] 0.0, 128
    %267 = vxpose.xlu0.b32.cont [11/16] 0.0, 128
    %268 = vxpose.xlu0.b32.cont [12/16] 0.0, 128
    %269 = vxpose.xlu0.b32.cont [13/16] 0.0, 128
    %270 = vxpose.xlu0.b32.cont [14/16] 0.0, 128
    %271 = vxpose.xlu0.b32.cont [15/16] 0.0, 128
    %272 = vxpose.xlu0.b32.end [16/16] 0.0, 128
    %v273 = vpop.trf.xlu0
    %v274 = vpop.trf.xlu0
    %v275 = vpop.trf.xlu0
    %v276 = vpop.trf.xlu0
    %v277 = vpop.trf.xlu0
    %v278 = vpop.trf.xlu0
    %v279 = vpop.trf.xlu0
    %v280 = vpop.trf.xlu0
    %v281 = vpop.trf.xlu0
    %v282 = vpop.trf.xlu0
    %v283 = vpop.trf.xlu0
    %v284 = vpop.trf.xlu0
    %v285 = vpop.trf.xlu0
    %v286 = vpop.trf.xlu0
    %v287 = vpop.trf.xlu0
    %v288 = vpop.trf.xlu0
    %v289 = vlaneseq
    %v290 = vshrl.u32 %v289, 7
    %v291 = vsub.s32 0, %v290
    %v292 = vrot.slane %v273, %v291
    %v293 = vmul.f32 %v256, %v292
    %v294 = vmax.f32 %v293, 1e-16
    %v295 = vrsqrt.pop %v294
    %v296 = vmul.f32 %v250, %v295
    %v297 = vld [vmem:[#allocation8] sm:$0xff]
    %v298 = vmul.f32 %v297, %v297
    %v299 = vsel %vm61, %v298, 0.0
    %300 = vadd.xlane.f32.xlu0 %v299
    %v301 = vpop.xlane.xlu0 %300
    %v302 = vmax.f32 %v301, 1e-08
    %v303 = vrcp.pop %v302
    %v304 = vmul.f32 %v301, %v303
    %v305 = vld [vmem:[%s5] sm:$0xff]
    %vm306 = vcmp.eq.s32.totalorder %v305, 2
    %v307 = vsel %vm306, %v178, %v296
    %v308 = vsel %vm59, %v304, %v307
    %vm309 = vcmask 64512
    %310 = vst.msk [vmem:[#allocation13] sm:$0xff] %vm309, %v308
    %vm311 = vcmp.gt.s32.totalorder %v305, 0
    %vm312 = vmor %vm59, %vm311
    %v313 = vmul.f32 %v308, 5.0
    %v314 = vmul.f32 %v313, 1.442695
    %v315 = vpow.pop %v314
    %v316 = vsel %vm312, 0.0, %v315
    %317 = vst.msk [vmem:[#allocation2] sm:$0xff] %vm309, %v316
    %s318 = sld [smem:[#allocation6]]
    %s319 = sld [smem:[#allocation7]]
    %s320 = scalar_lea.vmem [#allocation2], %s318
    %v321 = vld [vmem:[%s320] sm:$0x1]
    %vm322 = vcmask 57344
    %323 = vst.msk [vmem:[#allocation3] sm:$0x1] %vm322, %v321
    %s324 = scalar_lea.vmem [#allocation2], %s319
    %v325 = vld [vmem:[%s324] sm:$0x1]
    %326 = vst.msk [vmem:[#allocation3 + $0x6] sm:$0x1] %vm322, %v325
    %s327 = scalar_lea.vmem [#allocation13], %s318
    %v328 = vld [vmem:[%s327] sm:$0x1]
    %s329 = scalar_lea.vmem [#allocation13], %s319
    %v330 = vld [vmem:[%s329] sm:$0x1]
    %v331 = vstv %s319
    %vm332 = vcmp.eq.s32.totalorder %v58, %v331
    %v333 = vsel %vm332, %v328, 0.0
    %334 = vst.msk [vmem:[#allocation4] sm:$0x1] %vm322, %v333
    %v335 = vstv %s318
    %vm336 = vcmp.eq.s32.totalorder %v58, %v335
    %v337 = vsel %vm336, %v330, 0.0
    %338 = vst.msk [vmem:[#allocation4 + $0x6] sm:$0x1] %vm322, %v337
    %s339 = sld [smem:[#allocation6 + $0x1]]
    %s340 = sld [smem:[#allocation7 + $0x1]]
    %s341 = scalar_lea.vmem [#allocation2], %s339
    %v342 = vld [vmem:[%s341] sm:$0x1]
    %343 = vst.msk [vmem:[#allocation3 + $0x1] sm:$0x1] %vm322, %v342
    %s344 = scalar_lea.vmem [#allocation2], %s340
    %v345 = vld [vmem:[%s344] sm:$0x1]
    %346 = vst.msk [vmem:[#allocation3 + $0x7] sm:$0x1] %vm322, %v345
    %s347 = scalar_lea.vmem [#allocation13], %s339
    %v348 = vld [vmem:[%s347] sm:$0x1]
    %s349 = scalar_lea.vmem [#allocation13], %s340
    %v350 = vld [vmem:[%s349] sm:$0x1]
    %v351 = vstv %s340
    %vm352 = vcmp.eq.s32.totalorder %v58, %v351
    %v353 = vsel %vm352, %v348, 0.0
    %354 = vst.msk [vmem:[#allocation4 + $0x1] sm:$0x1] %vm322, %v353
    %v355 = vstv %s339
    %vm356 = vcmp.eq.s32.totalorder %v58, %v355
    %v357 = vsel %vm356, %v350, 0.0
    %358 = vst.msk [vmem:[#allocation4 + $0x7] sm:$0x1] %vm322, %v357
    %s359 = sld [smem:[#allocation6 + $0x2]]
    %s360 = sld [smem:[#allocation7 + $0x2]]
    %s361 = scalar_lea.vmem [#allocation2], %s359
    %v362 = vld [vmem:[%s361] sm:$0x1]
    %363 = vst.msk [vmem:[#allocation3 + $0x2] sm:$0x1] %vm322, %v362
    %s364 = scalar_lea.vmem [#allocation2], %s360
    %v365 = vld [vmem:[%s364] sm:$0x1]
    %366 = vst.msk [vmem:[#allocation3 + $0x8] sm:$0x1] %vm322, %v365
    %s367 = scalar_lea.vmem [#allocation13], %s359
    %v368 = vld [vmem:[%s367] sm:$0x1]
    %s369 = scalar_lea.vmem [#allocation13], %s360
    %v370 = vld [vmem:[%s369] sm:$0x1]
    %v371 = vstv %s360
    %vm372 = vcmp.eq.s32.totalorder %v58, %v371
    %v373 = vsel %vm372, %v368, 0.0
    %374 = vst.msk [vmem:[#allocation4 + $0x2] sm:$0x1] %vm322, %v373
    %v375 = vstv %s359
    %vm376 = vcmp.eq.s32.totalorder %v58, %v375
    %v377 = vsel %vm376, %v370, 0.0
    %378 = vst.msk [vmem:[#allocation4 + $0x8] sm:$0x1] %vm322, %v377
    %s379 = sld [smem:[#allocation6 + $0x3]]
    %s380 = sld [smem:[#allocation7 + $0x3]]
    %s381 = scalar_lea.vmem [#allocation2], %s379
    %v382 = vld [vmem:[%s381] sm:$0x1]
    %383 = vst.msk [vmem:[#allocation3 + $0x3] sm:$0x1] %vm322, %v382
    %s384 = scalar_lea.vmem [#allocation2], %s380
    %v385 = vld [vmem:[%s384] sm:$0x1]
    %386 = vst.msk [vmem:[#allocation3 + $0x9] sm:$0x1] %vm322, %v385
    %s387 = scalar_lea.vmem [#allocation13], %s379
    %v388 = vld [vmem:[%s387] sm:$0x1]
    %s389 = scalar_lea.vmem [#allocation13], %s380
    %v390 = vld [vmem:[%s389] sm:$0x1]
    %v391 = vstv %s380
    %vm392 = vcmp.eq.s32.totalorder %v58, %v391
    %v393 = vsel %vm392, %v388, 0.0
    %394 = vst.msk [vmem:[#allocation4 + $0x3] sm:$0x1] %vm322, %v393
    %v395 = vstv %s379
    %vm396 = vcmp.eq.s32.totalorder %v58, %v395
    %v397 = vsel %vm396, %v390, 0.0
    %398 = vst.msk [vmem:[#allocation4 + $0x9] sm:$0x1] %vm322, %v397
    %s399 = sld [smem:[#allocation6 + $0x4]]
    %s400 = sld [smem:[#allocation7 + $0x4]]
    %s401 = scalar_lea.vmem [#allocation2], %s399
    %v402 = vld [vmem:[%s401] sm:$0x1]
    %403 = vst.msk [vmem:[#allocation3 + $0x4] sm:$0x1] %vm322, %v402
    %s404 = scalar_lea.vmem [#allocation2], %s400
    %v405 = vld [vmem:[%s404] sm:$0x1]
    %406 = vst.msk [vmem:[#allocation3 + $0xa] sm:$0x1] %vm322, %v405
    %s407 = scalar_lea.vmem [#allocation13], %s399
    %v408 = vld [vmem:[%s407] sm:$0x1]
    %s409 = scalar_lea.vmem [#allocation13], %s400
    %v410 = vld [vmem:[%s409] sm:$0x1]
    %v411 = vstv %s400
    %vm412 = vcmp.eq.s32.totalorder %v58, %v411
    %v413 = vsel %vm412, %v408, 0.0
    %414 = vst.msk [vmem:[#allocation4 + $0x4] sm:$0x1] %vm322, %v413
    %v415 = vstv %s399
    %vm416 = vcmp.eq.s32.totalorder %v58, %v415
    %v417 = vsel %vm416, %v410, 0.0
    %418 = vst.msk [vmem:[#allocation4 + $0xa] sm:$0x1] %vm322, %v417
    %s419 = sld [smem:[#allocation6 + $0x5]]
    %s420 = sld [smem:[#allocation7 + $0x5]]
    %s421 = scalar_lea.vmem [#allocation2], %s419
    %v422 = vld [vmem:[%s421] sm:$0x1]
    %423 = vst.msk [vmem:[#allocation3 + $0x5] sm:$0x1] %vm322, %v422
    %s424 = scalar_lea.vmem [#allocation2], %s420
    %v425 = vld [vmem:[%s424] sm:$0x1]
    %426 = vst.msk [vmem:[#allocation3 + $0xb] sm:$0x1] %vm322, %v425
    %s427 = scalar_lea.vmem [#allocation13], %s419
    %v428 = vld [vmem:[%s427] sm:$0x1]
    %s429 = scalar_lea.vmem [#allocation13], %s420
    %v430 = vld [vmem:[%s429] sm:$0x1]
    %v431 = vstv %s420
    %vm432 = vcmp.eq.s32.totalorder %v58, %v431
    %v433 = vsel %vm432, %v428, 0.0
    %434 = vst.msk [vmem:[#allocation4 + $0x5] sm:$0x1] %vm322, %v433
    %v435 = vstv %s419
    %vm436 = vcmp.eq.s32.totalorder %v58, %v435
    %v437 = vsel %vm436, %v430, 0.0
    %438 = vst.msk [vmem:[#allocation4 + $0xb] sm:$0x1] %vm322, %v437
    %v439 = vld [vmem:[#allocation3] sm:$0xff]
    %v440 = vld [vmem:[#allocation3 + $0x8] sm:$0xf]
    %v441 = vld [vmem:[#allocation4] sm:$0xff]
    %v442 = vld [vmem:[#allocation4 + $0x8] sm:$0xf]
    %v443 = vsel %vm309, %v441, 0.0
    %444 = vadd.xlane.f32.xlu0 %v443
    %v445 = vpop.xlane.xlu0 %444
    %vm446 = vcmask 60416
    %v447 = vsel %vm446, %v442, 0.0
    %448 = vadd.xlane.f32.xlu0 %v447
    %v449 = vpop.xlane.xlu0 %448
    %v450 = vmul.f32 %v445, 5.0
    %v451 = vmul.f32 %v449, 5.0
    %v452 = vmul.f32 %v450, 1.442695
    %v453 = vpow.pop %v452
    %v454 = vmul.f32 %v451, 1.442695
    %v455 = vpow.pop %v454
    %457 = vset.pattern.permute.xlu0 0
    %458 = vperm.xlu0 %457, %v439
    %v459 = vpop.permute.xlu0 %458
    %462 = vset.pattern.permute.xlu0 0
    %463 = vperm.xlu0 %462, %v440
    %v464 = vpop.permute.xlu0 %463
    %vm466 = vcmp.lt.f32.partialorder %v459, %v439
    %vm467 = vcmp.lt.f32.partialorder %v464, %v440
    %v468 = vsel %vm466, 1, 0
    %v469 = vsel %vm467, 1, 0
    %v470 = vcvt.s32.f32 %v468
    %v471 = vcvt.s32.f32 %v469
    %v472 = vadd.f32 %v470, 0.0
    %v473 = vadd.f32 %v471, 0.0
    %474 = vset.pattern.permute.xlu0 1
    %475 = vperm.xlu0 %474, %v439
    %v476 = vpop.permute.xlu0 %475
    %478 = vset.pattern.permute.xlu0 1
    %479 = vperm.xlu0 %478, %v440
    %v480 = vpop.permute.xlu0 %479
    %vm482 = vcmp.lt.f32.partialorder %v476, %v439
    %vm483 = vcmp.lt.f32.partialorder %v480, %v440
    %v484 = vsel %vm482, 1, 0
    %v485 = vsel %vm483, 1, 0
    %v486 = vcvt.s32.f32 %v484
    %v487 = vcvt.s32.f32 %v485
    %v488 = vadd.f32 %v472, %v486
    %v489 = vadd.f32 %v473, %v487
    %490 = vset.pattern.permute.xlu0 2
    %491 = vperm.xlu0 %490, %v439
    %v492 = vpop.permute.xlu0 %491
    %494 = vset.pattern.permute.xlu0 2
    %495 = vperm.xlu0 %494, %v440
    %v496 = vpop.permute.xlu0 %495
    %vm498 = vcmp.lt.f32.partialorder %v492, %v439
    %vm499 = vcmp.lt.f32.partialorder %v496, %v440
    %v500 = vsel %vm498, 1, 0
    %v501 = vsel %vm499, 1, 0
    %v502 = vcvt.s32.f32 %v500
    %v503 = vcvt.s32.f32 %v501
    %v504 = vadd.f32 %v488, %v502
    %v505 = vadd.f32 %v489, %v503
    %506 = vset.pattern.permute.xlu0 3
    %507 = vperm.xlu0 %506, %v439
    %v508 = vpop.permute.xlu0 %507
    %510 = vset.pattern.permute.xlu0 3
    %511 = vperm.xlu0 %510, %v440
    %v512 = vpop.permute.xlu0 %511
    %vm514 = vcmp.lt.f32.partialorder %v508, %v439
    %vm515 = vcmp.lt.f32.partialorder %v512, %v440
    %v516 = vsel %vm514, 1, 0
    %v517 = vsel %vm515, 1, 0
    %v518 = vcvt.s32.f32 %v516
    %v519 = vcvt.s32.f32 %v517
    %v520 = vadd.f32 %v504, %v518
    %v521 = vadd.f32 %v505, %v519
    %522 = vset.pattern.permute.xlu0 4
    %523 = vperm.xlu0 %522, %v439
    %v524 = vpop.permute.xlu0 %523
    %526 = vset.pattern.permute.xlu0 4
    %527 = vperm.xlu0 %526, %v440
    %v528 = vpop.permute.xlu0 %527
    %vm530 = vcmp.lt.f32.partialorder %v524, %v439
    %vm531 = vcmp.lt.f32.partialorder %v528, %v440
    %v532 = vsel %vm530, 1, 0
    %v533 = vsel %vm531, 1, 0
    %v534 = vcvt.s32.f32 %v532
    %v535 = vcvt.s32.f32 %v533
    %v536 = vadd.f32 %v520, %v534
    %v537 = vadd.f32 %v521, %v535
    %538 = vset.pattern.permute.xlu0 5
    %539 = vperm.xlu0 %538, %v439
    %v540 = vpop.permute.xlu0 %539
    %542 = vset.pattern.permute.xlu0 5
    %543 = vperm.xlu0 %542, %v440
    %v544 = vpop.permute.xlu0 %543
    %vm546 = vcmp.lt.f32.partialorder %v540, %v439
    %vm547 = vcmp.lt.f32.partialorder %v544, %v440
    %v548 = vsel %vm546, 1, 0
    %v549 = vsel %vm547, 1, 0
    %v550 = vcvt.s32.f32 %v548
    %v551 = vcvt.s32.f32 %v549
    %v552 = vadd.f32 %v536, %v550
    %v553 = vadd.f32 %v537, %v551
    %554 = vset.pattern.permute.xlu0 6
    %555 = vperm.xlu0 %554, %v439
    %v556 = vpop.permute.xlu0 %555
    %558 = vset.pattern.permute.xlu0 6
    %559 = vperm.xlu0 %558, %v440
    %v560 = vpop.permute.xlu0 %559
    %vm562 = vcmp.lt.f32.partialorder %v556, %v439
    %vm563 = vcmp.lt.f32.partialorder %v560, %v440
    %v564 = vsel %vm562, 1, 0
    %v565 = vsel %vm563, 1, 0
    %v566 = vcvt.s32.f32 %v564
    %v567 = vcvt.s32.f32 %v565
    %v568 = vadd.f32 %v552, %v566
    %v569 = vadd.f32 %v553, %v567
    %570 = vset.pattern.permute.xlu0 7
    %571 = vperm.xlu0 %570, %v439
    %v572 = vpop.permute.xlu0 %571
    %574 = vset.pattern.permute.xlu0 7
    %575 = vperm.xlu0 %574, %v440
    %v576 = vpop.permute.xlu0 %575
    %vm578 = vcmp.lt.f32.partialorder %v572, %v439
    %vm579 = vcmp.lt.f32.partialorder %v576, %v440
    %v580 = vsel %vm578, 1, 0
    %v581 = vsel %vm579, 1, 0
    %v582 = vcvt.s32.f32 %v580
    %v583 = vcvt.s32.f32 %v581
    %v584 = vadd.f32 %v568, %v582
    %v585 = vadd.f32 %v569, %v583
    %vm586 = vcmp.le.f32.partialorder %v584, 5.0
    %vm587 = vcmp.le.f32.partialorder %v585, 5.0
    %v588 = vsel %vm586, %v439, -1.0
    %v589 = vsel %vm587, %v440, -1.0
    %v590 = vsel %vm309, %v588, -inf
    %591 = vmax.xlane.f32.xlu0 %v590
    %v592 = vpop.xlane.xlu0 %591
    %v593 = vsel %vm446, %v589, -inf
    %594 = vmax.xlane.f32.xlu0 %v593
    %v595 = vpop.xlane.xlu0 %594
    %vm596 = vcmp.le.f32.partialorder %v584, 6.0
    %vm597 = vcmp.le.f32.partialorder %v585, 6.0
    %v598 = vsel %vm596, %v439, -1.0
    %v599 = vsel %vm597, %v440, -1.0
    %v600 = vsel %vm309, %v598, -inf
    %601 = vmax.xlane.f32.xlu0 %v600
    %v602 = vpop.xlane.xlu0 %601
    %v603 = vsel %vm446, %v599, -inf
    %604 = vmax.xlane.f32.xlu0 %v603
    %v605 = vpop.xlane.xlu0 %604
    %v606 = vsub.f32 %v602, %v592
    %v607 = vsub.f32 %v605, %v595
    %v608 = vmul.f32 %v606, 0.6
    %v609 = vmul.f32 %v607, 0.6
    %v610 = vadd.f32 %v592, %v608
    %v611 = vadd.f32 %v595, %v609
    %vm612 = vcmp.ge.f32.partialorder %v439, %v610
    %vm613 = vcmp.ge.f32.partialorder %v440, %v611
    %v614 = vsel %vm612, %v439, 0.0
    %v615 = vsel %vm613, %v440, 0.0
    %v616 = vsel %vm309, %v614, 0.0
    %617 = vadd.xlane.f32.xlu0 %v616
    %v618 = vpop.xlane.xlu0 %617
    %v619 = vsel %vm446, %v615, 0.0
    %620 = vadd.xlane.f32.xlu0 %v619
    %v621 = vpop.xlane.xlu0 %620
    %v622 = vadd.f32 %v453, %v618
    %v623 = vadd.f32 %v455, %v621
    %v624 = vrcp.pop %v622
    %v625 = vmul.f32 %v453, %v624
    %v626 = vrcp.pop %v623
    %v627 = vmul.f32 %v455, %v626
    %v628 = vlog2.pop %v625
    %v629 = vmul.f32 %v628, 0.6931472
    %v630 = vlog2.pop %v627
    %v631 = vmul.f32 %v630, 0.6931472
    %v632 = vsub.f32 0.0, %v629
    %v633 = vsub.f32 0.0, %v631
    %vm634 = vcmask 1043456
    %v635 = vsel %vm634, %v633, 0.0
    %v636 = vadd.f32 %v632, %v635
    %v637 = vrot.slane %v636, 4
    %v638 = vadd.f32 %v636, %v637
    %v639 = vrot.slane %v638, 2
    %v640 = vadd.f32 %v638, %v639
    %v641 = vrot.slane %v640, 1
    %v642 = vadd.f32 %v640, %v641
    %v643 = vrcp.pop 12.0
    %v644 = vmul.f32 %v642, %v643
    %vm645 = vcmask 0
    %646 = vst.msk [vmem:[#allocation14] sm:$0x1] %vm645, %v644
    // Predicated region
    $region26: #{tpu_custom_call.1} parent=1 // pred_check
      _
    $region27: #{tpu_custom_call.1} parent=1 // pred_check_branch
      %648 = sbr.rel (0) target = $region29
    $region28: #{tpu_custom_call.1} parent=1 // pred_region
      %s650 = ssub.s32 128, 128
      %651 = vsyncadd [#allocation10], %s650
      %s653 = sshll.u32 [#allocation13], 4
      %s654 = int_to_ptr.vmem [resolvable:$true] %s653
      %656 = dma.vmem_to_hbm [thread:$0]  %s654, 128, %s6, [#allocation10]
    $region29: #{tpu_custom_call.1} parent=1 // pred_fallthru
      _
    // Predicated region
    $region30: #{tpu_custom_call.1} parent=1 // pred_check
      _
    $region31: #{tpu_custom_call.1} parent=1 // pred_check_branch
      %658 = sbr.rel (0) target = $region33
    $region32: #{tpu_custom_call.1} parent=1 // pred_region
      %s660 = ssub.s32 16, 16
      %661 = vsyncadd [#allocation15], %s660
      %s663 = sshll.u32 [#allocation14], 4
      %s664 = int_to_ptr.vmem [resolvable:$true] %s663
      %666 = dma.vmem_to_hbm [thread:$0]  %s664, 16, %s7, [#allocation15]
    $region33: #{tpu_custom_call.1} parent=1 // pred_fallthru
      _
    // Predicated region
    $region34: #{tpu_custom_call.1} parent=1 // pred_check
      _
    $region35: #{tpu_custom_call.1} parent=1 // pred_check_branch
      %668 = sbr.rel (0) target = $region37
    $region36: #{tpu_custom_call.1} parent=1 // pred_region
      %669 = dma.done [#allocation10], 128
    $region37: #{tpu_custom_call.1} parent=1 // pred_fallthru
      _
    // Predicated region
    $region38: #{tpu_custom_call.1} parent=1 // pred_check
      _
    $region39: #{tpu_custom_call.1} parent=1 // pred_check_branch
      %671 = sbr.rel (0) target = $region41
    $region40: #{tpu_custom_call.1} parent=1 // pred_region
      %672 = dma.done [#allocation15], 16
    $region41: #{tpu_custom_call.1} parent=1 // pred_fallthru
      _
    %673 = vsyncpa [#allocation9], 1
    %674 = vsyncpa [#allocation12], 1
    %675 = vsyncpa [#allocation10], 1
    %676 = vsyncpa [#allocation15], 1

</llo_original>
